<compile_context>
chip_gen: v7x
topology: tpu7x:2x2x1
jax: 0.10.0
libtpu: 0.0.40
codegen_flags: <defaults>
</compile_context>

<pallas_src>
import numpy as np
import jax
import jax.numpy as jnp
from jax.experimental import pallas as pl
from jax.experimental.pallas import tpu as pltpu

_LANE = 128


def _pick_row_tile(height, width, target_tokens=2048):
    """Largest divisor TH of `height` with TH*width <= ~target tokens and a
    sublane-aligned (multiple-of-8) tile; falls back to the full image."""
    cap = max(1, min(height, max(1, target_tokens // max(width, 1))))
    for th in range(cap, 0, -1):
        if height % th == 0 and (th * width) % 8 == 0:
            return th
    return height        # full-image tile (block == full N, always legal)


def _make_dwconv_kernel(TH, W, TC):
    NT = TH * W                 # tokens written per grid step
    NP = NT + 2 * W             # tokens incl. the +/-1-row halo

    def kernel(xm_ref, xu_ref, xd_ref, w_ref, b_ref, o_ref, hp_ref):
        r = pl.program_id(2)
        nr = pl.num_programs(2)
        f32 = jnp.float32

        # Assemble the row-padded tile (rows [-1, TH] of this row block) in a
        # small VMEM scratch.  Halo rows outside the image are zeroed (this
        # implements the conv's zero padding along y).
        top_ok = (r > 0).astype(f32)
        bot_ok = (r < nr - 1).astype(f32)
        mid = xm_ref[0].astype(f32)                           # (NT, TC)
        hp_ref[pl.ds(0, W), :] = xu_ref[0, 0].astype(f32) * top_ok
        hp_ref[pl.ds(W, NT), :] = mid
        hp_ref[pl.ds(W + NT, W), :] = xd_ref[0, 0].astype(f32) * bot_ok
        hp = hp_ref[...]                                      # (NP, TC)

        # dx = -1 / +1 neighbours: two XLU sublane rolls on the flat token
        # axis; cross-row wrap positions are zeroed by the column masks
        # (computed in-kernel, applied once per rolled copy).
        left = pltpu.roll(hp, shift=1, axis=0)                # hp[n-1]
        right = pltpu.roll(hp, shift=NP - 1, axis=0)          # hp[n+1]
        col = jax.lax.broadcasted_iota(jnp.int32, (NP, TC), 0) % W
        left = jnp.where(col > 0, left, 0.0)                  # zero pad at x=0
        right = jnp.where(col < W - 1, right, 0.0)            # zero pad at x=W-1

        # Centre tap + bias initialise the accumulator (no roll, no mask).
        acc = mid * w_ref[4] + b_ref[...]                     # (NT, TC)
        srcs = (left, hp, right)                              # kx = 0, 1, 2
        for k in range(9):
            if k == 4:
                continue
            ky, kx = k // 3, k % 3                            # dy = ky-1, dx = kx-1
            off = ky * W                                      # row offset into padded tile
            acc = acc + srcs[kx][off:off + NT] * w_ref[k]     # VPU MAC per tap
        o_ref[0] = acc.astype(o_ref.dtype)

    return kernel


def seg_dwconv_pallas(x, dw_w, dw_b, height, width, *, row_tile=None):
    """x: (B, N, C); dw_w: (C, 3, 3) (the Conv2d (C,1,3,3) weight with its
    singleton input-channel dim dropped); dw_b: (C,).  Returns (B, N, C)."""
    B, N, C = x.shape
    assert N == height * width
    orig_C = C

    # Pad channels to a lane-dense multiple of 128 (padded channels produce
    # zeros and are sliced off after the call).
    C_pad = ((C + _LANE - 1) // _LANE) * _LANE
    if C_pad != C:
        x = jnp.pad(x, ((0, 0), (0, 0), (0, C_pad - C)))
        dw_w = jnp.pad(dw_w, ((0, C_pad - C), (0, 0), (0, 0)))
        dw_b = jnp.pad(dw_b, ((0, C_pad - C),))

    if row_tile is None:
        TH = _pick_row_tile(height, width)
    else:
        TH = row_tile
        assert height % TH == 0 and ((TH * width) % 8 == 0 or TH == height), \
            "row_tile must divide H and give a sublane-aligned token tile"
    R = height // TH
    TC = _LANE

    # taps[k, 0, c] = dw_w[c, k//3, k%3]
    taps = jnp.transpose(dw_w.reshape(C_pad, 9), (1, 0)).reshape(9, 1, C_pad)
    taps = taps.astype(jnp.float32)
    bias = dw_b.reshape(1, C_pad).astype(jnp.float32)

    x4 = x.reshape(B, height, width, C_pad)       # image view for the halo rows

    kernel = _make_dwconv_kernel(TH, width, TC)
    grid = (C_pad // TC, B, R)

    out = pl.pallas_call(
        kernel,
        out_shape=jax.ShapeDtypeStruct((B, N, C_pad), x.dtype),
        grid_spec=pltpu.PrefetchScalarGridSpec(
            num_scalar_prefetch=0,
            grid=grid,
            in_specs=[
                # centre rows of this row-block (flat token view)
                pl.BlockSpec((1, TH * width, TC), lambda c, b, r: (b, r, c)),
                # single-row halo above (clamped at the top; zeroed in-kernel)
                pl.BlockSpec((1, 1, width, TC),
                             lambda c, b, r: (b, jnp.maximum(r * TH - 1, 0), 0, c)),
                # single-row halo below (clamped at the bottom; zeroed in-kernel)
                pl.BlockSpec((1, 1, width, TC),
                             lambda c, b, r: (b, jnp.minimum(r * TH + TH, height - 1), 0, c)),
                # per-channel tap weights / bias (constant over the inner grid axes)
                pl.BlockSpec((9, 1, TC), lambda c, b, r: (0, 0, c)),
                pl.BlockSpec((1, TC), lambda c, b, r: (0, c)),
            ],
            out_specs=pl.BlockSpec((1, TH * width, TC), lambda c, b, r: (b, r, c)),
            scratch_shapes=[pltpu.VMEM(((TH + 2) * width, TC), jnp.float32)],
        ),
        compiler_params=pltpu.CompilerParams(
            dimension_semantics=("parallel", "parallel", "parallel"),
            vmem_limit_bytes=32 * 1024 * 1024),
    )(x, x4, x4, taps, bias)

    return out[..., :orig_C] if C_pad != orig_C else out


def seg_dwconv_reference(x, dw_w, dw_b, height, width):
    """Pure-JAX reference matching the PyTorch forward exactly."""
    B, N, C = x.shape
    img = jnp.transpose(x, (0, 2, 1)).reshape(B, C, height, width)   # NCHW
    pad = jnp.pad(img, ((0, 0), (0, 0), (1, 1), (1, 1)))
    conv = jnp.zeros_like(img)
    for ky in range(3):
        for kx in range(3):
            conv = conv + (pad[:, :, ky:ky + height, kx:kx + width]
                           * dw_w[:, ky, kx][None, :, None, None])
    conv = conv + dw_b[None, :, None, None]
    return jnp.transpose(conv.reshape(B, C, N), (0, 2, 1))


if __name__ == "__main__":
    B, H, W = 2, 16, 16
    N = H * W
    C = 160                       # non-multiple of 128: exercises channel padding

    key = jax.random.PRNGKey(0)
    ks = jax.random.split(key, 3)
    x = jax.random.normal(ks[0], (B, N, C), jnp.float32)
    dw_w = jax.random.normal(ks[1], (C, 3, 3), jnp.float32) / 3.0
    dw_b = jax.random.normal(ks[2], (C,), jnp.float32) * 0.02

    ref = seg_dwconv_reference(x, dw_w, dw_b, H, W)

    # Multi-row-tile path (exercises the +/-1-row halo logic): H/TH = 4 tiles.
    out = seg_dwconv_pallas(x, dw_w, dw_b, H, W, row_tile=4)
    out = jax.block_until_ready(out)
    np.testing.assert_allclose(np.asarray(out), np.asarray(ref),
                               rtol=1e-4, atol=1e-4)

    # Auto-tiled path with bf16 I/O at the pallas_call boundary (f32 accumulate).
    x_bf16 = x.astype(jnp.bfloat16)
    ref_bf = seg_dwconv_reference(x_bf16.astype(jnp.float32), dw_w, dw_b, H, W)
    out_bf = seg_dwconv_pallas(x_bf16, dw_w, dw_b, H, W)
    out_bf = jax.block_until_ready(out_bf)
    np.testing.assert_allclose(np.asarray(out_bf).astype(np.float32),
                               np.asarray(ref_bf), rtol=2e-2, atol=2e-2)

    print("KERNEL_OK")
</pallas_src>

<mosaic_0001>
module attributes {stable_mosaic.version = 11 : i64} {
  func.func @kernel(%arg0: i32, %arg1: i32, %arg2: i32, %arg3: memref<1x64x128xf32, #tpu.memory_space<vmem>>, %arg4: memref<1x1x16x128xf32, #tpu.memory_space<vmem>>, %arg5: memref<1x1x16x128xf32, #tpu.memory_space<vmem>>, %arg6: memref<9x1x128xf32, #tpu.memory_space<vmem>>, %arg7: memref<1x128xf32, #tpu.memory_space<vmem>>, %arg8: memref<1x64x128xf32, #tpu.memory_space<vmem>>, %arg9: memref<96x128xf32, #tpu.memory_space<vmem>>) attributes {dimension_semantics = [#tpu.dimension_semantics<parallel>, #tpu.dimension_semantics<parallel>, #tpu.dimension_semantics<parallel>], iteration_bounds = array<i64: 2, 2, 4>, scalar_prefetch = 0 : i64, scratch_operands = 1 : i64, tpu.core_type = #tpu.core_type<tc>, window_params = [{transform_indices = @transform_0, window_bounds = array<i64: 1, 64, 128>}, {transform_indices = @transform_1, window_bounds = array<i64: 1, 1, 16, 128>}, {transform_indices = @transform_2, window_bounds = array<i64: 1, 1, 16, 128>}, {transform_indices = @transform_3, window_bounds = array<i64: 9, 1, 128>}, {transform_indices = @transform_4, window_bounds = array<i64: 1, 128>}, {transform_indices = @transform_5, window_bounds = array<i64: 1, 64, 128>}]} {
    %c0_i32 = arith.constant 0 : i32
    %0 = arith.cmpi sgt, %arg2, %c0_i32 : i32
    %1 = arith.extui %0 : i1 to i32
    %2 = arith.sitofp %1 : i32 to f32
    %c3_i32 = arith.constant 3 : i32
    %3 = arith.cmpi slt, %arg2, %c3_i32 : i32
    %4 = arith.extui %3 : i1 to i32
    %5 = arith.sitofp %4 : i32 to f32
    %c0 = arith.constant 0 : index
    %c0_0 = arith.constant 0 : index
    %c0_1 = arith.constant 0 : index
    %6 = vector.load %arg3[%c0, %c0_0, %c0_1] : memref<1x64x128xf32, #tpu.memory_space<vmem>>, vector<1x64x128xf32>
    %7 = vector.shape_cast %6 : vector<1x64x128xf32> to vector<64x128xf32>
    %c0_2 = arith.constant 0 : index
    %c0_3 = arith.constant 0 : index
    %c0_4 = arith.constant 0 : index
    %c0_5 = arith.constant 0 : index
    %8 = vector.load %arg4[%c0_2, %c0_3, %c0_4, %c0_5] : memref<1x1x16x128xf32, #tpu.memory_space<vmem>>, vector<1x1x16x128xf32>
    %9 = vector.shape_cast %8 : vector<1x1x16x128xf32> to vector<16x128xf32>
    %10 = vector.broadcast %2 : f32 to vector<16x128xf32>
    %11 = arith.mulf %9, %10 : vector<16x128xf32>
    %c0_6 = arith.constant 0 : index
    %c0_7 = arith.constant 0 : index
    %12 = vector.load %arg9[%c0_6, %c0_7] : memref<96x128xf32, #tpu.memory_space<vmem>>, vector<16x128xf32>
    tpu.vector_store %arg9[%c0_6, %c0_7], %11 {strides = array<i32>} : memref<96x128xf32, #tpu.memory_space<vmem>>, vector<16x128xf32>,
    %c16 = arith.constant 16 : index
    %c0_8 = arith.constant 0 : index
    %13 = vector.load %arg9[%c16, %c0_8] : memref<96x128xf32, #tpu.memory_space<vmem>>, vector<64x128xf32>
    tpu.vector_store %arg9[%c16, %c0_8], %7 {strides = array<i32>} : memref<96x128xf32, #tpu.memory_space<vmem>>, vector<64x128xf32>,
    %c0_9 = arith.constant 0 : index
    %c0_10 = arith.constant 0 : index
    %c0_11 = arith.constant 0 : index
    %c0_12 = arith.constant 0 : index
    %14 = vector.load %arg5[%c0_9, %c0_10, %c0_11, %c0_12] : memref<1x1x16x128xf32, #tpu.memory_space<vmem>>, vector<1x1x16x128xf32>
    %15 = vector.shape_cast %14 : vector<1x1x16x128xf32> to vector<16x128xf32>
    %16 = vector.broadcast %5 : f32 to vector<16x128xf32>
    %17 = arith.mulf %15, %16 : vector<16x128xf32>
    %c80 = arith.constant 80 : index
    %c0_13 = arith.constant 0 : index
    %18 = vector.load %arg9[%c80, %c0_13] : memref<96x128xf32, #tpu.memory_space<vmem>>, vector<16x128xf32>
    tpu.vector_store %arg9[%c80, %c0_13], %17 {strides = array<i32>} : memref<96x128xf32, #tpu.memory_space<vmem>>, vector<16x128xf32>,
    %c0_14 = arith.constant 0 : index
    %c0_15 = arith.constant 0 : index
    %19 = vector.load %arg9[%c0_14, %c0_15] : memref<96x128xf32, #tpu.memory_space<vmem>>, vector<96x128xf32>
    %c1_i32 = arith.constant 1 : i32
    %20 = tpu.dynamic_rotate %19 by %c1_i32 dim 0 : vector<96x128xf32>, i32 -> vector<96x128xf32>
    %c95_i32 = arith.constant 95 : i32
    %21 = tpu.dynamic_rotate %19 by %c95_i32 dim 0 : vector<96x128xf32>, i32 -> vector<96x128xf32>
    %22 = tpu.iota {dimensions = array<i32: 0>} : vector<96x128xi32>
    %c16_i32 = arith.constant 16 : i32
    %c0_i32_16 = arith.constant 0 : i32
    %23 = arith.cmpi eq, %c16_i32, %c0_i32_16 : i32
    %c1_i32_17 = arith.constant 1 : i32
    %24 = arith.select %23, %c1_i32_17, %c16_i32 : i32
    %25 = vector.broadcast %24 : i32 to vector<96x128xi32>
    %26 = arith.remsi %22, %25 : vector<96x128xi32>
    %c0_i32_18 = arith.constant 0 : i32
    %27 = vector.broadcast %c0_i32_18 : i32 to vector<96x128xi32>
    %28 = arith.cmpi ne, %26, %27 : vector<96x128xi32>
    %c0_i32_19 = arith.constant 0 : i32
    %29 = vector.broadcast %c0_i32_19 : i32 to vector<96x128xi32>
    %30 = arith.cmpi slt, %26, %29 : vector<96x128xi32>
    %c0_i32_20 = arith.constant 0 : i32
    %31 = arith.cmpi slt, %24, %c0_i32_20 : i32
    %32 = vector.broadcast %31 : i1 to vector<96x128xi1>
    %33 = vector.broadcast %32 : vector<96x128xi1> to vector<96x128xi1>
    %34 = arith.xori %30, %33 : vector<96x128xi1>
    %35 = arith.andi %34, %28 : vector<96x128xi1>
    %36 = vector.broadcast %24 : i32 to vector<96x128xi32>
    %37 = arith.addi %26, %36 : vector<96x128xi32>
    %38 = arith.select %35, %37, %26 : vector<96x128xi1>, vector<96x128xi32>
    %c0_i32_21 = arith.constant 0 : i32
    %39 = vector.broadcast %c0_i32_21 : i32 to vector<96x128xi32>
    %40 = arith.cmpi sgt, %38, %39 : vector<96x128xi32>
    %cst = arith.constant 0.000000e+00 : f32
    %41 = vector.broadcast %cst : f32 to vector<96x128xf32>
    %42 = arith.select %40, %20, %41 : vector<96x128xi1>, vector<96x128xf32>
    %c15_i32 = arith.constant 15 : i32
    %43 = vector.broadcast %c15_i32 : i32 to vector<96x128xi32>
    %44 = arith.cmpi slt, %38, %43 : vector<96x128xi32>
    %cst_22 = arith.constant 0.000000e+00 : f32
    %45 = vector.broadcast %cst_22 : f32 to vector<96x128xf32>
    %46 = arith.select %44, %21, %45 : vector<96x128xi1>, vector<96x128xf32>
    %c4 = arith.constant 4 : index
    %c0_23 = arith.constant 0 : index
    %c0_24 = arith.constant 0 : index
    %47 = vector.load %arg6[%c4, %c0_23, %c0_24] : memref<9x1x128xf32, #tpu.memory_space<vmem>>, vector<1x1x128xf32>
    %48 = vector.shape_cast %47 : vector<1x1x128xf32> to vector<1x128xf32>
    %49 = vector.broadcast %48 : vector<1x128xf32> to vector<64x128xf32>
    %50 = arith.mulf %7, %49 : vector<64x128xf32>
    %c0_25 = arith.constant 0 : index
    %c0_26 = arith.constant 0 : index
    %51 = vector.load %arg7[%c0_25, %c0_26] : memref<1x128xf32, #tpu.memory_space<vmem>>, vector<1x128xf32>
    %52 = vector.broadcast %51 : vector<1x128xf32> to vector<64x128xf32>
    %53 = arith.addf %50, %52 : vector<64x128xf32>
    %54 = vector.extract_strided_slice %42 {offsets = [0, 0], sizes = [64, 128], strides = [1, 1]} : vector<96x128xf32> to vector<64x128xf32>
    %c0_27 = arith.constant 0 : index
    %c0_28 = arith.constant 0 : index
    %c0_29 = arith.constant 0 : index
    %55 = vector.load %arg6[%c0_27, %c0_28, %c0_29] : memref<9x1x128xf32, #tpu.memory_space<vmem>>, vector<1x1x128xf32>
    %56 = vector.shape_cast %55 : vector<1x1x128xf32> to vector<1x128xf32>
    %57 = vector.broadcast %56 : vector<1x128xf32> to vector<64x128xf32>
    %58 = arith.mulf %54, %57 : vector<64x128xf32>
    %59 = arith.addf %53, %58 : vector<64x128xf32>
    %60 = vector.extract_strided_slice %19 {offsets = [0, 0], sizes = [64, 128], strides = [1, 1]} : vector<96x128xf32> to vector<64x128xf32>
    %c1 = arith.constant 1 : index
    %c0_30 = arith.constant 0 : index
    %c0_31 = arith.constant 0 : index
    %61 = vector.load %arg6[%c1, %c0_30, %c0_31] : memref<9x1x128xf32, #tpu.memory_space<vmem>>, vector<1x1x128xf32>
    %62 = vector.shape_cast %61 : vector<1x1x128xf32> to vector<1x128xf32>
    %63 = vector.broadcast %62 : vector<1x128xf32> to vector<64x128xf32>
    %64 = arith.mulf %60, %63 : vector<64x128xf32>
    %65 = arith.addf %59, %64 : vector<64x128xf32>
    %66 = vector.extract_strided_slice %46 {offsets = [0, 0], sizes = [64, 128], strides = [1, 1]} : vector<96x128xf32> to vector<64x128xf32>
    %c2 = arith.constant 2 : index
    %c0_32 = arith.constant 0 : index
    %c0_33 = arith.constant 0 : index
    %67 = vector.load %arg6[%c2, %c0_32, %c0_33] : memref<9x1x128xf32, #tpu.memory_space<vmem>>, vector<1x1x128xf32>
    %68 = vector.shape_cast %67 : vector<1x1x128xf32> to vector<1x128xf32>
    %69 = vector.broadcast %68 : vector<1x128xf32> to vector<64x128xf32>
    %70 = arith.mulf %66, %69 : vector<64x128xf32>
    %71 = arith.addf %65, %70 : vector<64x128xf32>
    %72 = vector.extract_strided_slice %42 {offsets = [16, 0], sizes = [64, 128], strides = [1, 1]} : vector<96x128xf32> to vector<64x128xf32>
    %c3 = arith.constant 3 : index
    %c0_34 = arith.constant 0 : index
    %c0_35 = arith.constant 0 : index
    %73 = vector.load %arg6[%c3, %c0_34, %c0_35] : memref<9x1x128xf32, #tpu.memory_space<vmem>>, vector<1x1x128xf32>
    %74 = vector.shape_cast %73 : vector<1x1x128xf32> to vector<1x128xf32>
    %75 = vector.broadcast %74 : vector<1x128xf32> to vector<64x128xf32>
    %76 = arith.mulf %72, %75 : vector<64x128xf32>
    %77 = arith.addf %71, %76 : vector<64x128xf32>
    %78 = vector.extract_strided_slice %46 {offsets = [16, 0], sizes = [64, 128], strides = [1, 1]} : vector<96x128xf32> to vector<64x128xf32>
    %c5 = arith.constant 5 : index
    %c0_36 = arith.constant 0 : index
    %c0_37 = arith.constant 0 : index
    %79 = vector.load %arg6[%c5, %c0_36, %c0_37] : memref<9x1x128xf32, #tpu.memory_space<vmem>>, vector<1x1x128xf32>
    %80 = vector.shape_cast %79 : vector<1x1x128xf32> to vector<1x128xf32>
    %81 = vector.broadcast %80 : vector<1x128xf32> to vector<64x128xf32>
    %82 = arith.mulf %78, %81 : vector<64x128xf32>
    %83 = arith.addf %77, %82 : vector<64x128xf32>
    %84 = vector.extract_strided_slice %42 {offsets = [32, 0], sizes = [64, 128], strides = [1, 1]} : vector<96x128xf32> to vector<64x128xf32>
    %c6 = arith.constant 6 : index
    %c0_38 = arith.constant 0 : index
    %c0_39 = arith.constant 0 : index
    %85 = vector.load %arg6[%c6, %c0_38, %c0_39] : memref<9x1x128xf32, #tpu.memory_space<vmem>>, vector<1x1x128xf32>
    %86 = vector.shape_cast %85 : vector<1x1x128xf32> to vector<1x128xf32>
    %87 = vector.broadcast %86 : vector<1x128xf32> to vector<64x128xf32>
    %88 = arith.mulf %84, %87 : vector<64x128xf32>
    %89 = arith.addf %83, %88 : vector<64x128xf32>
    %90 = vector.extract_strided_slice %19 {offsets = [32, 0], sizes = [64, 128], strides = [1, 1]} : vector<96x128xf32> to vector<64x128xf32>
    %c7 = arith.constant 7 : index
    %c0_40 = arith.constant 0 : index
    %c0_41 = arith.constant 0 : index
    %91 = vector.load %arg6[%c7, %c0_40, %c0_41] : memref<9x1x128xf32, #tpu.memory_space<vmem>>, vector<1x1x128xf32>
    %92 = vector.shape_cast %91 : vector<1x1x128xf32> to vector<1x128xf32>
    %93 = vector.broadcast %92 : vector<1x128xf32> to vector<64x128xf32>
    %94 = arith.mulf %90, %93 : vector<64x128xf32>
    %95 = arith.addf %89, %94 : vector<64x128xf32>
    %96 = vector.extract_strided_slice %46 {offsets = [32, 0], sizes = [64, 128], strides = [1, 1]} : vector<96x128xf32> to vector<64x128xf32>
    %c8 = arith.constant 8 : index
    %c0_42 = arith.constant 0 : index
    %c0_43 = arith.constant 0 : index
    %97 = vector.load %arg6[%c8, %c0_42, %c0_43] : memref<9x1x128xf32, #tpu.memory_space<vmem>>, vector<1x1x128xf32>
    %98 = vector.shape_cast %97 : vector<1x1x128xf32> to vector<1x128xf32>
    %99 = vector.broadcast %98 : vector<1x128xf32> to vector<64x128xf32>
    %100 = arith.mulf %96, %99 : vector<64x128xf32>
    %101 = arith.addf %95, %100 : vector<64x128xf32>
    %c0_44 = arith.constant 0 : index
    %c0_45 = arith.constant 0 : index
    %c0_46 = arith.constant 0 : index
    %102 = vector.load %arg8[%c0_44, %c0_45, %c0_46] : memref<1x64x128xf32, #tpu.memory_space<vmem>>, vector<1x64x128xf32>
    %103 = vector.shape_cast %102 : vector<1x64x128xf32> to vector<64x128xf32>
    %104 = vector.shape_cast %101 : vector<64x128xf32> to vector<1x64x128xf32>
    tpu.vector_store %arg8[%c0_44, %c0_45, %c0_46], %104 {strides = array<i32>} : memref<1x64x128xf32, #tpu.memory_space<vmem>>, vector<1x64x128xf32>,
    return
  }
  func.func @transform_0(%arg0: i32, %arg1: i32, %arg2: i32) -> (i32, i32, i32) {
    %c0_i32 = arith.constant 0 : i32
    return %arg1, %arg2, %arg0 : i32, i32, i32
  }
  func.func @transform_1(%arg0: i32, %arg1: i32, %arg2: i32) -> (i32, i32, i32, i32) {
    %c4_i32 = arith.constant 4 : i32
    %0 = arith.muli %arg2, %c4_i32 : i32
    %c1_i32 = arith.constant 1 : i32
    %1 = arith.subi %0, %c1_i32 : i32
    %c0_i32 = arith.constant 0 : i32
    %2 = arith.maxsi %1, %c0_i32 : i32
    %c0_i32_0 = arith.constant 0 : i32
    %c0_i32_1 = arith.constant 0 : i32
    return %arg1, %2, %c0_i32_0, %arg0 : i32, i32, i32, i32
  }
  func.func @transform_2(%arg0: i32, %arg1: i32, %arg2: i32) -> (i32, i32, i32, i32) {
    %c4_i32 = arith.constant 4 : i32
    %0 = arith.muli %arg2, %c4_i32 : i32
    %c4_i32_0 = arith.constant 4 : i32
    %1 = arith.addi %0, %c4_i32_0 : i32
    %c15_i32 = arith.constant 15 : i32
    %2 = arith.minsi %1, %c15_i32 : i32
    %c0_i32 = arith.constant 0 : i32
    %c0_i32_1 = arith.constant 0 : i32
    return %arg1, %2, %c0_i32, %arg0 : i32, i32, i32, i32
  }
  func.func @transform_3(%arg0: i32, %arg1: i32, %arg2: i32) -> (i32, i32, i32) {
    %c0_i32 = arith.constant 0 : i32
    %c0_i32_0 = arith.constant 0 : i32
    %c0_i32_1 = arith.constant 0 : i32
    return %c0_i32, %c0_i32_0, %arg0 : i32, i32, i32
  }
  func.func @transform_4(%arg0: i32, %arg1: i32, %arg2: i32) -> (i32, i32) {
    %c0_i32 = arith.constant 0 : i32
    %c0_i32_0 = arith.constant 0 : i32
    return %c0_i32, %arg0 : i32, i32
  }
  func.func @transform_5(%arg0: i32, %arg1: i32, %arg2: i32) -> (i32, i32, i32) {
    %c0_i32 = arith.constant 0 : i32
    return %arg1, %arg2, %arg0 : i32, i32, i32
  }
}

</mosaic_0001>

<llo_original>
// kernel: tpu_custom_call.1
$region0: #{tpu_custom_call.1}
  #allocation0 [shape = 'u32[]', space=smem, size = 0x4, offset = 0x4, fixed_abs, tag = 'smem constant byte address 0x4 - core index']
  #allocation1 [shape = 'u32[144,128]{1,0:T(1,128)}', space=vmem, size = 0x12000, scoped, tag = 'internal scratch']
  #allocation2 [shape = 'f32[96,128]{1,0:T(8,128)}', space=vmem, size = 0xc000, scoped, tag = 'scratch operand']
  %s0 = inlined_call_operand.hbm [shape: f32[2,256,256], index: 0, kind: input, shape index: {}]
  %s1 = inlined_call_operand.hbm [shape: f32[2,16,16,256], index: 1, kind: input, shape index: {}]
  %s2 = inlined_call_operand.hbm [shape: f32[2,16,16,256], index: 2, kind: input, shape index: {}]
  %s3 = inlined_call_operand.hbm [shape: f32[9,1,256], index: 3, kind: input, shape index: {}]
  %s4 = inlined_call_operand.vmem [shape: f32[1,256], index: 4, kind: input, shape index: {}]
  %s5 = inlined_call_operand.hbm [shape: f32[2,256,256], index: 5, kind: output, shape index: {}]
  %s6 = sld [smem:[#allocation0]]
  $region69: #{tpu_custom_call.1} parent=0
    _
  %s8 = ssub.s32 1, %s6
  %s9 = scalar_select 0, %s8, %s6
  $region1: #{tpu_custom_call.1} parent=0
    #allocation3 [shape = 'u8[65536]{0}', space=vmem, size = 0x10000, scoped, tag = 'input window, operand 0']
    #allocation4 [shape = 's32[2]{0}', space=sflag, size = 0x8, scoped, tag = 'scoped memory for tpu_custom_call.1']
    #allocation5 [shape = 's32[2]{0}', space=sflag, size = 0x8, scoped, tag = 'scoped memory for tpu_custom_call.1']
    #allocation6 [shape = 'u8[16384]{0}', space=vmem, size = 0x4000, scoped, tag = 'input window, operand 1']
    #allocation7 [shape = 's32[2]{0}', space=sflag, size = 0x8, scoped, tag = 'scoped memory for tpu_custom_call.1']
    #allocation8 [shape = 'u8[16384]{0}', space=vmem, size = 0x4000, scoped, tag = 'input window, operand 2']
    #allocation9 [shape = 'u8[9216]{0}', space=vmem, size = 0x2400, scoped, tag = 'input window, operand 3']
    #allocation10 [shape = 's32[2]{0}', space=sflag, size = 0x8, scoped, tag = 'scoped memory for tpu_custom_call.1']
    #allocation11 [shape = 'u8[65536]{0}', space=vmem, size = 0x10000, scoped, tag = 'output window, operand 0']
    %10 = vsyncpa [#allocation4], 0
    %s11 = scalar_lea.sflag [#allocation4], 1
    %12 = vsyncpa %s11, 0
    %13 = vsyncpa [#allocation7], 0
    %s14 = scalar_lea.sflag [#allocation7], 1
    %15 = vsyncpa %s14, 0
    %16 = vsyncpa [#allocation10], 0
    %s17 = scalar_lea.sflag [#allocation10], 1
    %18 = vsyncpa %s17, 0
    %19 = vsyncpa [#allocation5], 0
    %s20 = scalar_lea.sflag [#allocation5], 1
    %21 = vsyncpa %s20, 0
    loop: start=0, step=1, limit=18
    $region2: #{tpu_custom_call.1} parent=1 // loop_pre_header
      _
    $region3: #{tpu_custom_call.1} parent=1 // loop_header
      %s23 = sphi 0, %s27
      %p24 = scmp.ge.s32.totalorder %s23, 18
      %s30 = sphi 0, %s49
      %s31 = sphi 0, %s45
      %s32 = sphi 0, %s41
      %s33 = sphi 0, %s30
      %s34 = sphi 0, %s31
      %s35 = sphi 0, %s32
      %s36 = sphi 0, %s33
      %s37 = sphi 0, %s34
      %s38 = sphi 0, %s35
      %s56 = sphi 0, %s58
      %s59 = sphi 0, %s56
      %s60 = sphi 0, %s59
      %s76 = sphi 0, %s60
      %s94 = sphi 0, %s96
      %s97 = sphi 0, %s94
      %s98 = sphi 0, %s97
      %s114 = sphi 0, %s98
      %s132 = sphi 0, %s134
      %s135 = sphi 0, %s132
      %s136 = sphi 0, %s135
      %s152 = sphi 0, %s136
      %s158 = sphi 0, %s160
      %s161 = sphi 0, %s158
      %s162 = sphi 0, %s161
      %s178 = sphi 0, %s162
      %s184 = sphi 0, %s186
      %s187 = sphi 0, %s184
      %s188 = sphi 0, %s187
      %s204 = sphi 0, %s188
      %s214 = sphi 0, %s216
      %s217 = sphi 0, %s214
      %s218 = sphi 0, %s217
      %s234 = sphi 0, %s218
    $region4: #{tpu_custom_call.1} parent=1 // loop_header_branch
      %26 = sbr.rel (%p24) target = $region8
    $region5: #{tpu_custom_call.1} parent=1 // loop_body
      %s28 = ssub.s32 %s23, 1
      %s29 = ssub.s32 %s23, 2
      %s39 = sadd.s32 1, %s32
      %p40 = scmp.ge.s32.totalorder %s39, 4
      %s41 = scalar_select %p40, 0, %s39
      %s42 = sadd.s32 1, %s31
      %s43 = scalar_select %p40, %s42, %s31
      %p44 = scmp.ge.s32.totalorder %s43, 2
      %s45 = scalar_select %p44, 0, %s43
      %s46 = sadd.s32 1, %s30
      %s47 = scalar_select %p44, %s46, %s30
      %p48 = scmp.ge.s32.totalorder %s47, 2
      %s49 = scalar_select %p48, 0, %s47
      %s50 = ssub.s32 %s31, %s45
      %s51 = ssub.s32 %s32, %s41
      %s52 = sor.u32 %s50, %s51
      %s53 = ssub.s32 %s30, %s49
      %s54 = sor.u32 %s52, %s53
      %p55 = scmp.eq.s32.totalorder %s54, 0
      %s57 = sadd.s32 %s56, 1
      %s58 = scalar_select %p55, %s56, %s57
      %p61 = pneg %p55
      %p62 = scmp.eq.s32.totalorder %s23, 15
      %p63 = por %p61, %p62
      %p64 = scmp.ne.s32.totalorder %s56, %s59
      %p65 = scmp.eq.s32.totalorder %s23, 0
      %p66 = por %p64, %p65
      %p67 = scmp.ne.s32.totalorder %s56, %s59
      %p68 = scmp.eq.s32.totalorder %s28, 15
      %p69 = por %p67, %p68
      %p70 = scmp.ne.s32.totalorder %s59, %s60
      %p71 = scmp.eq.s32.totalorder %s28, 0
      %p72 = por %p70, %p71
      %p73 = scmp.ne.s32.totalorder %s59, %s60
      %p74 = scmp.eq.s32.totalorder %s29, 15
      %p75 = por %p73, %p74
      %p77 = scmp.ne.s32.totalorder %s60, %s76
      %p78 = scmp.eq.s32.totalorder %s29, 0
      %p79 = por %p77, %p78
      %s80 = smul.u32 %s32, 4
      %s81 = ssub.s32 %s80, 1
      %p82 = scmp.gt.s32.totalorder %s81, 0
      %s83 = scalar_select %p82, %s81, 0
      %s84 = smul.u32 %s41, 4
      %s85 = ssub.s32 %s84, 1
      %p86 = scmp.gt.s32.totalorder %s85, 0
      %s87 = scalar_select %p86, %s85, 0
      %s88 = ssub.s32 %s31, %s45
      %s89 = ssub.s32 %s83, %s87
      %s90 = sor.u32 %s88, %s89
      %s91 = ssub.s32 %s30, %s49
      %s92 = sor.u32 %s90, %s91
      %p93 = scmp.eq.s32.totalorder %s92, 0
      %s95 = sadd.s32 %s94, 1
      %s96 = scalar_select %p93, %s94, %s95
      %p99 = pneg %p93
      %p100 = scmp.eq.s32.totalorder %s23, 15
      %p101 = por %p99, %p100
      %p102 = scmp.ne.s32.totalorder %s94, %s97
      %p103 = scmp.eq.s32.totalorder %s23, 0
      %p104 = por %p102, %p103
      %p105 = scmp.ne.s32.totalorder %s94, %s97
      %p106 = scmp.eq.s32.totalorder %s28, 15
      %p107 = por %p105, %p106
      %p108 = scmp.ne.s32.totalorder %s97, %s98
      %p109 = scmp.eq.s32.totalorder %s28, 0
      %p110 = por %p108, %p109
      %p111 = scmp.ne.s32.totalorder %s97, %s98
      %p112 = scmp.eq.s32.totalorder %s29, 15
      %p113 = por %p111, %p112
      %p115 = scmp.ne.s32.totalorder %s98, %s114
      %p116 = scmp.eq.s32.totalorder %s29, 0
      %p117 = por %p115, %p116
      %s118 = smul.u32 %s32, 4
      %s119 = sadd.s32 %s118, 4
      %p120 = scmp.lt.s32.totalorder %s119, 15
      %s121 = scalar_select %p120, %s119, 15
      %s122 = smul.u32 %s41, 4
      %s123 = sadd.s32 %s122, 4
      %p124 = scmp.lt.s32.totalorder %s123, 15
      %s125 = scalar_select %p124, %s123, 15
      %s126 = ssub.s32 %s31, %s45
      %s127 = ssub.s32 %s121, %s125
      %s128 = sor.u32 %s126, %s127
      %s129 = ssub.s32 %s30, %s49
      %s130 = sor.u32 %s128, %s129
      %p131 = scmp.eq.s32.totalorder %s130, 0
      %s133 = sadd.s32 %s132, 1
      %s134 = scalar_select %p131, %s132, %s133
      %p137 = pneg %p131
      %p138 = scmp.eq.s32.totalorder %s23, 15
      %p139 = por %p137, %p138
      %p140 = scmp.ne.s32.totalorder %s132, %s135
      %p141 = scmp.eq.s32.totalorder %s23, 0
      %p142 = por %p140, %p141
      %p143 = scmp.ne.s32.totalorder %s132, %s135
      %p144 = scmp.eq.s32.totalorder %s28, 15
      %p145 = por %p143, %p144
      %p146 = scmp.ne.s32.totalorder %s135, %s136
      %p147 = scmp.eq.s32.totalorder %s28, 0
      %p148 = por %p146, %p147
      %p149 = scmp.ne.s32.totalorder %s135, %s136
      %p150 = scmp.eq.s32.totalorder %s29, 15
      %p151 = por %p149, %p150
      %p153 = scmp.ne.s32.totalorder %s136, %s152
      %p154 = scmp.eq.s32.totalorder %s29, 0
      %p155 = por %p153, %p154
      %s156 = ssub.s32 %s30, %s49
      %p157 = scmp.eq.s32.totalorder %s156, 0
      %s159 = sadd.s32 %s158, 1
      %s160 = scalar_select %p157, %s158, %s159
      %p163 = pneg %p157
      %p164 = scmp.eq.s32.totalorder %s23, 15
      %p165 = por %p163, %p164
      %p166 = scmp.ne.s32.totalorder %s158, %s161
      %p167 = scmp.eq.s32.totalorder %s23, 0
      %p168 = por %p166, %p167
      %p169 = scmp.ne.s32.totalorder %s158, %s161
      %p170 = scmp.eq.s32.totalorder %s28, 15
      %p171 = por %p169, %p170
      %p172 = scmp.ne.s32.totalorder %s161, %s162
      %p173 = scmp.eq.s32.totalorder %s28, 0
      %p174 = por %p172, %p173
      %p175 = scmp.ne.s32.totalorder %s161, %s162
      %p176 = scmp.eq.s32.totalorder %s29, 15
      %p177 = por %p175, %p176
      %p179 = scmp.ne.s32.totalorder %s162, %s178
      %p180 = scmp.eq.s32.totalorder %s29, 0
      %p181 = por %p179, %p180
      %s182 = ssub.s32 %s30, %s49
      %p183 = scmp.eq.s32.totalorder %s182, 0
      %s185 = sadd.s32 %s184, 1
      %s186 = scalar_select %p183, %s184, %s185
      %p189 = pneg %p183
      %p190 = scmp.eq.s32.totalorder %s23, 15
      %p191 = por %p189, %p190
      %p192 = scmp.ne.s32.totalorder %s184, %s187
      %p193 = scmp.eq.s32.totalorder %s23, 0
      %p194 = por %p192, %p193
      %p195 = scmp.ne.s32.totalorder %s184, %s187
      %p196 = scmp.eq.s32.totalorder %s28, 15
      %p197 = por %p195, %p196
      %p198 = scmp.ne.s32.totalorder %s187, %s188
      %p199 = scmp.eq.s32.totalorder %s28, 0
      %p200 = por %p198, %p199
      %p201 = scmp.ne.s32.totalorder %s187, %s188
      %p202 = scmp.eq.s32.totalorder %s29, 15
      %p203 = por %p201, %p202
      %p205 = scmp.ne.s32.totalorder %s188, %s204
      %p206 = scmp.eq.s32.totalorder %s29, 0
      %p207 = por %p205, %p206
      %s208 = ssub.s32 %s31, %s45
      %s209 = ssub.s32 %s32, %s41
      %s210 = sor.u32 %s208, %s209
      %s211 = ssub.s32 %s30, %s49
      %s212 = sor.u32 %s210, %s211
      %p213 = scmp.eq.s32.totalorder %s212, 0
      %s215 = sadd.s32 %s214, 1
      %s216 = scalar_select %p213, %s214, %s215
      %p219 = pneg %p213
      %p220 = scmp.eq.s32.totalorder %s23, 15
      %p221 = por %p219, %p220
      %p222 = scmp.ne.s32.totalorder %s214, %s217
      %p223 = scmp.eq.s32.totalorder %s23, 0
      %p224 = por %p222, %p223
      %p225 = scmp.ne.s32.totalorder %s214, %s217
      %p226 = scmp.eq.s32.totalorder %s28, 15
      %p227 = por %p225, %p226
      %p228 = scmp.ne.s32.totalorder %s217, %s218
      %p229 = scmp.eq.s32.totalorder %s28, 0
      %p230 = por %p228, %p229
      %p231 = scmp.ne.s32.totalorder %s217, %s218
      %p232 = scmp.eq.s32.totalorder %s29, 15
      %p233 = por %p231, %p232
      %p235 = scmp.ne.s32.totalorder %s218, %s234
      %p236 = scmp.eq.s32.totalorder %s29, 0
      %p237 = por %p235, %p236
      %p238 = scmp.le.s32.totalorder 1, %s23
      %p239 = scmp.lt.s32.totalorder %s23, 17
      %p240 = pnand %p238, %p239
      %p241 = pneg %p240
      // Predicated region
      $region9: #{tpu_custom_call.1} parent=5 // pred_check
        _
      $region10: #{tpu_custom_call.1} parent=5 // pred_check_branch
        %243 = sbr.rel (%p240) target = $region12
      $region11: #{tpu_custom_call.1} parent=5 // pred_region
        %s244 = ssub.s32 %s23, 1
      $region12: #{tpu_custom_call.1} parent=5 // pred_fallthru
        _
      %p245 = scmp.lt.s32.totalorder %s23, 16
      // Predicated region
      $region13: #{tpu_custom_call.1} parent=5 // pred_check
        %p246 = pneg %p245
      $region14: #{tpu_custom_call.1} parent=5 // pred_check_branch
        %248 = sbr.rel (%p246) target = $region16
      $region15: #{tpu_custom_call.1} parent=5 // pred_region
        // Predicated region
        $region17: #{tpu_custom_call.1} parent=15 // pred_check
          %p249 = pneg %p66
        $region18: #{tpu_custom_call.1} parent=15 // pred_check_branch
          %251 = sbr.rel (%p249) target = $region20
        $region19: #{tpu_custom_call.1} parent=15 // pred_region
          %s252 = sand.u32 %s56, 1
          %s253 = scalar_lea.sflag [#allocation4], %s252
          %s254 = sand.u32 %s56, 1
          %s255 = smul.addr %s254, 64
          %s256 = scalar_lea.vmem [#allocation3], %s255
          %s257 = smul.u32 8, %s32
          %s259 = ssub.s32 1024, 1024
          %260 = vsyncadd %s253, %s259
          %s261 = smul.addr %s257, 2
          %s262 = sadd.s32 %s30, %s261
          %s263 = smul.addr %s31, 64
          %s264 = sadd.s32 %s262, %s263
          %s265 = smul.addr %s264, 128
          %s266 = scalar_lea.hbm %s0, %s265
          %s267 = sshll.u32 %s256, 4
          %s268 = int_to_ptr.vmem [resolvable:$true] %s267
          %273 = dma.hbm_to_vmem [thread:$0]  %s266, 1024, %s268, %s253, 256, 128, 8
        $region20: #{tpu_custom_call.1} parent=15 // pred_fallthru
          _
        // Predicated region
        $region21: #{tpu_custom_call.1} parent=15 // pred_check
          %p274 = pneg %p104
        $region22: #{tpu_custom_call.1} parent=15 // pred_check_branch
          %276 = sbr.rel (%p274) target = $region24
        $region23: #{tpu_custom_call.1} parent=15 // pred_region
          %s277 = sand.u32 %s23, 1
          %s278 = scalar_lea.sflag [#allocation7], %s277
          %s279 = sand.u32 %s94, 1
          %s280 = smul.addr %s279, 16
          %s281 = scalar_lea.vmem [#allocation6], %s280
          %s282 = smul.u32 %s32, 4
          %s283 = ssub.s32 %s282, 1
          %p284 = scmp.gt.s32.totalorder %s283, 0
          %s285 = scalar_select %p284, %s283, 0
          %s287 = ssub.s32 256, 256
          %288 = vsyncadd %s278, %s287
          %s289 = smul.addr %s285, 4
          %s290 = sadd.s32 %s30, %s289
          %s291 = smul.addr %s31, 64
          %s292 = sadd.s32 %s290, %s291
          %s293 = smul.addr %s292, 128
          %s294 = scalar_lea.hbm %s1, %s293
          %s295 = sshll.u32 %s281, 4
          %s296 = int_to_ptr.vmem [resolvable:$true] %s295
          %301 = dma.hbm_to_vmem [thread:$0]  %s294, 256, %s296, %s278, 256, 128, 8
        $region24: #{tpu_custom_call.1} parent=15 // pred_fallthru
          _
        // Predicated region
        $region25: #{tpu_custom_call.1} parent=15 // pred_check
          %p302 = pneg %p142
        $region26: #{tpu_custom_call.1} parent=15 // pred_check_branch
          %304 = sbr.rel (%p302) target = $region28
        $region27: #{tpu_custom_call.1} parent=15 // pred_region
          %s305 = sand.u32 %s23, 1
          %s306 = scalar_lea.sflag [#allocation7], %s305
          %s307 = sand.u32 %s132, 1
          %s308 = smul.addr %s307, 16
          %s309 = scalar_lea.vmem [#allocation8], %s308
          %s310 = smul.u32 %s32, 4
          %s311 = sadd.s32 %s310, 4
          %p312 = scmp.lt.s32.totalorder %s311, 15
          %s313 = scalar_select %p312, %s311, 15
          %s315 = ssub.s32 256, 256
          %316 = vsyncadd %s306, %s315
          %s317 = smul.addr %s313, 4
          %s318 = sadd.s32 %s30, %s317
          %s319 = smul.addr %s31, 64
          %s320 = sadd.s32 %s318, %s319
          %s321 = smul.addr %s320, 128
          %s322 = scalar_lea.hbm %s2, %s321
          %s323 = sshll.u32 %s309, 4
          %s324 = int_to_ptr.vmem [resolvable:$true] %s323
          %329 = dma.hbm_to_vmem [thread:$0]  %s322, 256, %s324, %s306, 256, 128, 8
        $region28: #{tpu_custom_call.1} parent=15 // pred_fallthru
          _
        // Predicated region
        $region29: #{tpu_custom_call.1} parent=15 // pred_check
          %p330 = pneg %p168
        $region30: #{tpu_custom_call.1} parent=15 // pred_check_branch
          %332 = sbr.rel (%p330) target = $region32
        $region31: #{tpu_custom_call.1} parent=15 // pred_region
          %s333 = sand.u32 %s158, 1
          %s334 = scalar_lea.sflag [#allocation10], %s333
          %s335 = sand.u32 %s158, 1
          %s336 = smul.addr %s335, 9
          %s337 = scalar_lea.vmem [#allocation9], %s336
          %s339 = ssub.s32 144, 144
          %340 = vsyncadd %s334, %s339
          %s341 = smul.addr %s30, 16
          %s342 = scalar_lea.hbm %s3, %s341
          %s343 = sshll.u32 %s337, 4
          %s344 = int_to_ptr.vmem [resolvable:$true] %s343
          %349 = dma.hbm_to_vmem [thread:$0]  %s342, 144, %s344, %s334, 32, 16, 1
        $region32: #{tpu_custom_call.1} parent=15 // pred_fallthru
          _
        // Predicated region
        $region33: #{tpu_custom_call.1} parent=15 // pred_check
          %p350 = pneg %p194
        $region34: #{tpu_custom_call.1} parent=15 // pred_check_branch
          %352 = sbr.rel (%p350) target = $region36
        $region35: #{tpu_custom_call.1} parent=15 // pred_region
          %p353 = scmp.lt.s32.totalorder %s30, 1
          %s354 = scalar_select %p353, %s30, 1
          %s355 = scalar_lea.vmem %s4, %s354
        $region36: #{tpu_custom_call.1} parent=15 // pred_fallthru
          _
      $region16: #{tpu_custom_call.1} parent=5 // pred_fallthru
        _
      %p356 = scmp.le.s32.totalorder 1, %s23
      %p357 = scmp.lt.s32.totalorder %s23, 17
      %p358 = pnand %p356, %p357
      %p359 = pneg %p358
      // Predicated region
      $region37: #{tpu_custom_call.1} parent=5 // pred_check
        _
      $region38: #{tpu_custom_call.1} parent=5 // pred_check_branch
        %361 = sbr.rel (%p358) target = $region40
      $region39: #{tpu_custom_call.1} parent=5 // pred_region
        %s362 = ssub.s32 %s23, 1
        %s363 = sand.u32 %s59, 1
        %s364 = scalar_lea.sflag [#allocation4], %s363
        %s365 = sand.u32 %s59, 1
        %s366 = smul.addr %s365, 64
        %s367 = scalar_lea.vmem [#allocation3], %s366
        // Predicated region
        $region41: #{tpu_custom_call.1} parent=39 // pred_check
          %p368 = pneg %p72
        $region42: #{tpu_custom_call.1} parent=39 // pred_check_branch
          %370 = sbr.rel (%p368) target = $region44
        $region43: #{tpu_custom_call.1} parent=39 // pred_region
          %371 = dma.done %s364, 1024
        $region44: #{tpu_custom_call.1} parent=39 // pred_fallthru
          _
        %s372 = sand.u32 %s28, 1
        %s373 = scalar_lea.sflag [#allocation7], %s372
        %s374 = sand.u32 %s97, 1
        %s375 = smul.addr %s374, 16
        %s376 = scalar_lea.vmem [#allocation6], %s375
        // Predicated region
        $region45: #{tpu_custom_call.1} parent=39 // pred_check
          %p377 = pneg %p110
        $region46: #{tpu_custom_call.1} parent=39 // pred_check_branch
          %379 = sbr.rel (%p377) target = $region48
        $region47: #{tpu_custom_call.1} parent=39 // pred_region
          %380 = dma.done %s373, 256
        $region48: #{tpu_custom_call.1} parent=39 // pred_fallthru
          _
        %s381 = sand.u32 %s28, 1
        %s382 = scalar_lea.sflag [#allocation7], %s381
        %s383 = sand.u32 %s135, 1
        %s384 = smul.addr %s383, 16
        %s385 = scalar_lea.vmem [#allocation8], %s384
        // Predicated region
        $region49: #{tpu_custom_call.1} parent=39 // pred_check
          %p386 = pneg %p148
        $region50: #{tpu_custom_call.1} parent=39 // pred_check_branch
          %388 = sbr.rel (%p386) target = $region52
        $region51: #{tpu_custom_call.1} parent=39 // pred_region
          %389 = dma.done %s382, 256
        $region52: #{tpu_custom_call.1} parent=39 // pred_fallthru
          _
        %s390 = sand.u32 %s161, 1
        %s391 = scalar_lea.sflag [#allocation10], %s390
        %s392 = sand.u32 %s161, 1
        %s393 = smul.addr %s392, 9
        %s394 = scalar_lea.vmem [#allocation9], %s393
        // Predicated region
        $region53: #{tpu_custom_call.1} parent=39 // pred_check
          %p395 = pneg %p174
        $region54: #{tpu_custom_call.1} parent=39 // pred_check_branch
          %397 = sbr.rel (%p395) target = $region56
        $region55: #{tpu_custom_call.1} parent=39 // pred_region
          %398 = dma.done %s391, 144
        $region56: #{tpu_custom_call.1} parent=39 // pred_fallthru
          _
        %s399 = sand.u32 %s59, 1
        %s400 = scalar_lea.sflag [#allocation4], %s399
        %s401 = sand.u32 %s59, 1
        %s402 = smul.addr %s401, 64
        %s403 = scalar_lea.vmem [#allocation3], %s402
        %p404 = pneg %p72
        %p405 = pneg %p69
        %s406 = sand.u32 %s28, 1
        %s407 = scalar_lea.sflag [#allocation7], %s406
        %s408 = sand.u32 %s97, 1
        %s409 = smul.addr %s408, 16
        %s410 = scalar_lea.vmem [#allocation6], %s409
        %p411 = pneg %p110
        %p412 = pneg %p107
        %s413 = sand.u32 %s28, 1
        %s414 = scalar_lea.sflag [#allocation7], %s413
        %s415 = sand.u32 %s135, 1
        %s416 = smul.addr %s415, 16
        %s417 = scalar_lea.vmem [#allocation8], %s416
        %p418 = pneg %p148
        %p419 = pneg %p145
        %s420 = sand.u32 %s161, 1
        %s421 = scalar_lea.sflag [#allocation10], %s420
        %s422 = sand.u32 %s161, 1
        %s423 = smul.addr %s422, 9
        %s424 = scalar_lea.vmem [#allocation9], %s423
        %p425 = pneg %p174
        %p426 = pneg %p171
        %p427 = scmp.lt.s32.totalorder %s33, 1
        %s428 = scalar_select %p427, %s33, 1
        %s429 = scalar_lea.vmem %s4, %s428
        %p430 = pneg %p200
        %p431 = pneg %p197
        %p432 = pneg %p230
        %p433 = pneg %p227
        %s434 = sand.u32 %s217, 1
        %s435 = scalar_lea.sflag [#allocation5], %s434
        %s436 = sand.u32 %s217, 1
        %s437 = smul.addr %s436, 64
        %s438 = scalar_lea.vmem [#allocation11], %s437
        %s439 = smul.u32 8, %s35
        %s440 = smul.u32 %s35, 4
        %s441 = ssub.s32 %s440, 1
        %p442 = scmp.gt.s32.totalorder %s441, 0
        %s443 = scalar_select %p442, %s441, 0
        %s444 = smul.u32 %s35, 4
        %s445 = sadd.s32 %s444, 4
        %p446 = scmp.lt.s32.totalorder %s445, 15
        %s447 = scalar_select %p446, %s445, 15
        %p448 = scmp.lt.s32.totalorder %s33, 1
        %s449 = scalar_select %p448, %s33, 1
        %s450 = scalar_lea.vmem %s4, %s449
        %s451 = smul.u32 8, %s35
        %p452 = scmp.gt.s32.totalorder %s35, 0
        %s453 = scalar_select %p452, 1, 0
        %s454 = scvt.s32.f32 %s453
        %p455 = scmp.lt.s32.totalorder %s35, 3
        %s456 = scalar_select %p455, 1, 0
        %s457 = scvt.s32.f32 %s456
        %v458 = vld [vmem:[%s367] sm:$0xff]
        %v459 = vld [vmem:[%s367 + $0x8] sm:$0xff]
        %v460 = vld [vmem:[%s367 + $0x10] sm:$0xff]
        %v461 = vld [vmem:[%s367 + $0x18] sm:$0xff]
        %v462 = vld [vmem:[%s367 + $0x20] sm:$0xff]
        %v463 = vld [vmem:[%s367 + $0x28] sm:$0xff]
        %v464 = vld [vmem:[%s367 + $0x30] sm:$0xff]
        %v465 = vld [vmem:[%s367 + $0x38] sm:$0xff]
        %v466 = vld [vmem:[%s376] sm:$0xff]
        %v467 = vld [vmem:[%s376 + $0x8] sm:$0xff]
        %v468 = vstv %s454
        %v469 = vmul.f32 %v466, %v468
        %v470 = vmul.f32 %v467, %v468
        %471 = vst [vmem:[#allocation2] sm:$0xff] %v469
        %472 = vst [vmem:[#allocation2 + $0x8] sm:$0xff] %v470
        %473 = vst [vmem:[#allocation2 + $0x10] sm:$0xff] %v458
        %474 = vst [vmem:[#allocation2 + $0x18] sm:$0xff] %v459
        %475 = vst [vmem:[#allocation2 + $0x20] sm:$0xff] %v460
        %476 = vst [vmem:[#allocation2 + $0x28] sm:$0xff] %v461
        %477 = vst [vmem:[#allocation2 + $0x30] sm:$0xff] %v462
        %478 = vst [vmem:[#allocation2 + $0x38] sm:$0xff] %v463
        %479 = vst [vmem:[#allocation2 + $0x40] sm:$0xff] %v464
        %480 = vst [vmem:[#allocation2 + $0x48] sm:$0xff] %v465
        %v481 = vld [vmem:[%s385] sm:$0xff]
        %v482 = vld [vmem:[%s385 + $0x8] sm:$0xff]
        %v483 = vstv %s457
        %v484 = vmul.f32 %v481, %v483
        %v485 = vmul.f32 %v482, %v483
        %486 = vst [vmem:[#allocation2 + $0x50] sm:$0xff] %v484
        %487 = vst [vmem:[#allocation2 + $0x58] sm:$0xff] %v485
        %v488 = vld [vmem:[#allocation2] sm:$0xff]
        %v489 = vld [vmem:[#allocation2 + $0x8] sm:$0xff]
        %v490 = vld [vmem:[#allocation2 + $0x10] sm:$0xff]
        %v491 = vld [vmem:[#allocation2 + $0x18] sm:$0xff]
        %v492 = vld [vmem:[#allocation2 + $0x20] sm:$0xff]
        %v493 = vld [vmem:[#allocation2 + $0x28] sm:$0xff]
        %v494 = vld [vmem:[#allocation2 + $0x30] sm:$0xff]
        %v495 = vld [vmem:[#allocation2 + $0x38] sm:$0xff]
        %v496 = vld [vmem:[#allocation2 + $0x40] sm:$0xff]
        %v497 = vld [vmem:[#allocation2 + $0x48] sm:$0xff]
        %v498 = vld [vmem:[#allocation2 + $0x50] sm:$0xff]
        %v499 = vld [vmem:[#allocation2 + $0x58] sm:$0xff]
        %v500 = vrot.slane %v488, 7
        %v501 = vrot.slane %v489, 7
        %v502 = vrot.slane %v490, 7
        %v503 = vrot.slane %v491, 7
        %v504 = vrot.slane %v492, 7
        %v505 = vrot.slane %v493, 7
        %v506 = vrot.slane %v494, 7
        %v507 = vrot.slane %v495, 7
        %v508 = vrot.slane %v496, 7
        %v509 = vrot.slane %v497, 7
        %v510 = vrot.slane %v498, 7
        %v511 = vrot.slane %v499, 7
        %v512 = vlaneseq
        %v513 = vshrl.u32 %v512, 7
        %vm514 = vcmp.lt.s32.totalorder %v513, 1
        %v515 = vsel %vm514, %v510, %v511
        %v516 = vsel %vm514, %v509, %v510
        %v517 = vsel %vm514, %v508, %v509
        %v518 = vsel %vm514, %v507, %v508
        %v519 = vsel %vm514, %v506, %v507
        %v520 = vsel %vm514, %v505, %v506
        %v521 = vsel %vm514, %v504, %v505
        %v522 = vsel %vm514, %v503, %v504
        %v523 = vsel %vm514, %v502, %v503
        %v524 = vsel %vm514, %v501, %v502
        %v525 = vsel %vm514, %v500, %v501
        %v526 = vsel %vm514, %v511, %v500
        %v527 = vrot.slane %v488, 1
        %v528 = vrot.slane %v489, 1
        %v529 = vrot.slane %v490, 1
        %v530 = vrot.slane %v491, 1
        %v531 = vrot.slane %v492, 1
        %v532 = vrot.slane %v493, 1
        %v533 = vrot.slane %v494, 1
        %v534 = vrot.slane %v495, 1
        %v535 = vrot.slane %v496, 1
        %v536 = vrot.slane %v497, 1
        %v537 = vrot.slane %v498, 1
        %v538 = vrot.slane %v499, 1
        %vm539 = vcmp.lt.s32.totalorder %v513, 7
        %v540 = vsel %vm539, %v537, %v538
        %v541 = vsel %vm539, %v536, %v537
        %v542 = vsel %vm539, %v535, %v536
        %v543 = vsel %vm539, %v534, %v535
        %v544 = vsel %vm539, %v533, %v534
        %v545 = vsel %vm539, %v532, %v533
        %v546 = vsel %vm539, %v531, %v532
        %v547 = vsel %vm539, %v530, %v531
        %v548 = vsel %vm539, %v529, %v530
        %v549 = vsel %vm539, %v528, %v529
        %v550 = vsel %vm539, %v527, %v528
        %v551 = vsel %vm539, %v538, %v527
        %v552 = vadd.s32 %v513, 8
        %v553 = vadd.s32 %v513, 16
        %v554 = vadd.s32 %v513, 24
        %v555 = vadd.s32 %v513, 32
        %v556 = vadd.s32 %v513, 40
        %v557 = vadd.s32 %v513, 48
        %v558 = vadd.s32 %v513, 56
        %v559 = vadd.s32 %v513, 64
        %v560 = vadd.s32 %v513, 72
        %v561 = vadd.s32 %v513, 80
        %v562 = vadd.s32 %v513, 88
        %vm563 = vcmp.lt.s32.totalorder %v513, 0
        %v564 = vsub.s32 0, %v513
        %v565 = vsel %vm563, %v564, %v513
        %v566 = vshrl.u32 %v565, 4
        %v567 = vand.u32 %v565, 15
        %v568 = vsub.s32 0, %v567
        %v569 = vsel %vm563, %v568, %v567
        %vm570 = vcmp.lt.s32.totalorder %v552, 0
        %v571 = vsub.s32 0, %v552
        %v572 = vsel %vm570, %v571, %v552
        %v573 = vshrl.u32 %v572, 4
        %v574 = vand.u32 %v572, 15
        %v575 = vsub.s32 0, %v574
        %v576 = vsel %vm570, %v575, %v574
        %vm577 = vcmp.lt.s32.totalorder %v553, 0
        %v578 = vsub.s32 0, %v553
        %v579 = vsel %vm577, %v578, %v553
        %v580 = vshrl.u32 %v579, 4
        %v581 = vand.u32 %v579, 15
        %v582 = vsub.s32 0, %v581
        %v583 = vsel %vm577, %v582, %v581
        %vm584 = vcmp.lt.s32.totalorder %v554, 0
        %v585 = vsub.s32 0, %v554
        %v586 = vsel %vm584, %v585, %v554
        %v587 = vshrl.u32 %v586, 4
        %v588 = vand.u32 %v586, 15
        %v589 = vsub.s32 0, %v588
        %v590 = vsel %vm584, %v589, %v588
        %vm591 = vcmp.lt.s32.totalorder %v555, 0
        %v592 = vsub.s32 0, %v555
        %v593 = vsel %vm591, %v592, %v555
        %v594 = vshrl.u32 %v593, 4
        %v595 = vand.u32 %v593, 15
        %v596 = vsub.s32 0, %v595
        %v597 = vsel %vm591, %v596, %v595
        %vm598 = vcmp.lt.s32.totalorder %v556, 0
        %v599 = vsub.s32 0, %v556
        %v600 = vsel %vm598, %v599, %v556
        %v601 = vshrl.u32 %v600, 4
        %v602 = vand.u32 %v600, 15
        %v603 = vsub.s32 0, %v602
        %v604 = vsel %vm598, %v603, %v602
        %vm605 = vcmp.lt.s32.totalorder %v557, 0
        %v606 = vsub.s32 0, %v557
        %v607 = vsel %vm605, %v606, %v557
        %v608 = vshrl.u32 %v607, 4
        %v609 = vand.u32 %v607, 15
        %v610 = vsub.s32 0, %v609
        %v611 = vsel %vm605, %v610, %v609
        %vm612 = vcmp.lt.s32.totalorder %v558, 0
        %v613 = vsub.s32 0, %v558
        %v614 = vsel %vm612, %v613, %v558
        %v615 = vshrl.u32 %v614, 4
        %v616 = vand.u32 %v614, 15
        %v617 = vsub.s32 0, %v616
        %v618 = vsel %vm612, %v617, %v616
        %vm619 = vcmp.lt.s32.totalorder %v559, 0
        %v620 = vsub.s32 0, %v559
        %v621 = vsel %vm619, %v620, %v559
        %v622 = vshrl.u32 %v621, 4
        %v623 = vand.u32 %v621, 15
        %v624 = vsub.s32 0, %v623
        %v625 = vsel %vm619, %v624, %v623
        %vm626 = vcmp.lt.s32.totalorder %v560, 0
        %v627 = vsub.s32 0, %v560
        %v628 = vsel %vm626, %v627, %v560
        %v629 = vshrl.u32 %v628, 4
        %v630 = vand.u32 %v628, 15
        %v631 = vsub.s32 0, %v630
        %v632 = vsel %vm626, %v631, %v630
        %vm633 = vcmp.lt.s32.totalorder %v561, 0
        %v634 = vsub.s32 0, %v561
        %v635 = vsel %vm633, %v634, %v561
        %v636 = vshrl.u32 %v635, 4
        %v637 = vand.u32 %v635, 15
        %v638 = vsub.s32 0, %v637
        %v639 = vsel %vm633, %v638, %v637
        %vm640 = vcmp.lt.s32.totalorder %v562, 0
        %v641 = vsub.s32 0, %v562
        %v642 = vsel %vm640, %v641, %v562
        %v643 = vshrl.u32 %v642, 4
        %v644 = vand.u32 %v642, 15
        %v645 = vsub.s32 0, %v644
        %v646 = vsel %vm640, %v645, %v644
        %vm647 = vcmp.ne.s32.totalorder %v569, 0
        %vm648 = vcmp.ne.s32.totalorder %v576, 0
        %vm649 = vcmp.ne.s32.totalorder %v583, 0
        %vm650 = vcmp.ne.s32.totalorder %v590, 0
        %vm651 = vcmp.ne.s32.totalorder %v597, 0
        %vm652 = vcmp.ne.s32.totalorder %v604, 0
        %vm653 = vcmp.ne.s32.totalorder %v611, 0
        %vm654 = vcmp.ne.s32.totalorder %v618, 0
        %vm655 = vcmp.ne.s32.totalorder %v625, 0
        %vm656 = vcmp.ne.s32.totalorder %v632, 0
        %vm657 = vcmp.ne.s32.totalorder %v639, 0
        %vm658 = vcmp.ne.s32.totalorder %v646, 0
        %vm659 = vcmp.lt.s32.totalorder %v569, 0
        %vm660 = vcmp.lt.s32.totalorder %v576, 0
        %vm661 = vcmp.lt.s32.totalorder %v583, 0
        %vm662 = vcmp.lt.s32.totalorder %v590, 0
        %vm663 = vcmp.lt.s32.totalorder %v597, 0
        %vm664 = vcmp.lt.s32.totalorder %v604, 0
        %vm665 = vcmp.lt.s32.totalorder %v611, 0
        %vm666 = vcmp.lt.s32.totalorder %v618, 0
        %vm667 = vcmp.lt.s32.totalorder %v625, 0
        %vm668 = vcmp.lt.s32.totalorder %v632, 0
        %vm669 = vcmp.lt.s32.totalorder %v639, 0
        %vm670 = vcmp.lt.s32.totalorder %v646, 0
        %vm671 = vmand %vm659, %vm647
        %vm672 = vmand %vm660, %vm648
        %vm673 = vmand %vm661, %vm649
        %vm674 = vmand %vm662, %vm650
        %vm675 = vmand %vm663, %vm651
        %vm676 = vmand %vm664, %vm652
        %vm677 = vmand %vm665, %vm653
        %vm678 = vmand %vm666, %vm654
        %vm679 = vmand %vm667, %vm655
        %vm680 = vmand %vm668, %vm656
        %vm681 = vmand %vm669, %vm657
        %vm682 = vmand %vm670, %vm658
        %v683 = vadd.s32 %v569, 16
        %v684 = vadd.s32 %v576, 16
        %v685 = vadd.s32 %v583, 16
        %v686 = vadd.s32 %v590, 16
        %v687 = vadd.s32 %v597, 16
        %v688 = vadd.s32 %v604, 16
        %v689 = vadd.s32 %v611, 16
        %v690 = vadd.s32 %v618, 16
        %v691 = vadd.s32 %v625, 16
        %v692 = vadd.s32 %v632, 16
        %v693 = vadd.s32 %v639, 16
        %v694 = vadd.s32 %v646, 16
        %v695 = vsel %vm671, %v683, %v569
        %v696 = vsel %vm672, %v684, %v576
        %v697 = vsel %vm673, %v685, %v583
        %v698 = vsel %vm674, %v686, %v590
        %v699 = vsel %vm675, %v687, %v597
        %v700 = vsel %vm676, %v688, %v604
        %v701 = vsel %vm677, %v689, %v611
        %v702 = vsel %vm678, %v690, %v618
        %v703 = vsel %vm679, %v691, %v625
        %v704 = vsel %vm680, %v692, %v632
        %v705 = vsel %vm681, %v693, %v639
        %v706 = vsel %vm682, %v694, %v646
        %vm707 = vcmp.gt.s32.totalorder %v695, 0
        %vm708 = vcmp.gt.s32.totalorder %v696, 0
        %vm709 = vcmp.gt.s32.totalorder %v697, 0
        %vm710 = vcmp.gt.s32.totalorder %v698, 0
        %vm711 = vcmp.gt.s32.totalorder %v699, 0
        %vm712 = vcmp.gt.s32.totalorder %v700, 0
        %vm713 = vcmp.gt.s32.totalorder %v701, 0
        %vm714 = vcmp.gt.s32.totalorder %v702, 0
        %vm715 = vcmp.gt.s32.totalorder %v703, 0
        %vm716 = vcmp.gt.s32.totalorder %v704, 0
        %vm717 = vcmp.gt.s32.totalorder %v705, 0
        %vm718 = vcmp.gt.s32.totalorder %v706, 0
        %v719 = vsel %vm707, %v526, 0.0
        %v720 = vsel %vm708, %v525, 0.0
        %v721 = vsel %vm709, %v524, 0.0
        %v722 = vsel %vm710, %v523, 0.0
        %v723 = vsel %vm711, %v522, 0.0
        %v724 = vsel %vm712, %v521, 0.0
        %v725 = vsel %vm713, %v520, 0.0
        %v726 = vsel %vm714, %v519, 0.0
        %v727 = vsel %vm715, %v518, 0.0
        %v728 = vsel %vm716, %v517, 0.0
        %v729 = vsel %vm717, %v516, 0.0
        %v730 = vsel %vm718, %v515, 0.0
        %vm731 = vcmp.lt.s32.totalorder %v695, 15
        %vm732 = vcmp.lt.s32.totalorder %v696, 15
        %vm733 = vcmp.lt.s32.totalorder %v697, 15
        %vm734 = vcmp.lt.s32.totalorder %v698, 15
        %vm735 = vcmp.lt.s32.totalorder %v699, 15
        %vm736 = vcmp.lt.s32.totalorder %v700, 15
        %vm737 = vcmp.lt.s32.totalorder %v701, 15
        %vm738 = vcmp.lt.s32.totalorder %v702, 15
        %vm739 = vcmp.lt.s32.totalorder %v703, 15
        %vm740 = vcmp.lt.s32.totalorder %v704, 15
        %vm741 = vcmp.lt.s32.totalorder %v705, 15
        %vm742 = vcmp.lt.s32.totalorder %v706, 15
        %v743 = vsel %vm731, %v550, 0.0
        %v744 = vsel %vm732, %v549, 0.0
        %v745 = vsel %vm733, %v548, 0.0
        %v746 = vsel %vm734, %v547, 0.0
        %v747 = vsel %vm735, %v546, 0.0
        %v748 = vsel %vm736, %v545, 0.0
        %v749 = vsel %vm737, %v544, 0.0
        %v750 = vsel %vm738, %v543, 0.0
        %v751 = vsel %vm739, %v542, 0.0
        %v752 = vsel %vm740, %v541, 0.0
        %v753 = vsel %vm741, %v540, 0.0
        %v754 = vsel %vm742, %v551, 0.0
        %s755 = scalar_lea.vmem %s394, 4 [#allocation9]
        %v756 = vld [vmem:[%s755] sm:$0x1]
        %v758 = vlaneseq
        %v759 = vshrl.u32 %v758, 7
        %v760 = vsub.s32 0, %v759
        %v761 = vrot.slane %v756, %v760
        %v763 = vmul.f32 %v458, %v761
        %v764 = vmul.f32 %v459, %v761
        %v765 = vmul.f32 %v460, %v761
        %v766 = vmul.f32 %v461, %v761
        %v767 = vmul.f32 %v462, %v761
        %v768 = vmul.f32 %v463, %v761
        %v769 = vmul.f32 %v464, %v761
        %v770 = vmul.f32 %v465, %v761
        %v771 = vld [vmem:[%s450] sm:$0x1]
        %v773 = vlaneseq
        %v774 = vshrl.u32 %v773, 7
        %v775 = vsub.s32 0, %v774
        %v776 = vrot.slane %v771, %v775
        %v778 = vadd.f32 %v763, %v776
        %v779 = vadd.f32 %v764, %v776
        %v780 = vadd.f32 %v765, %v776
        %v781 = vadd.f32 %v766, %v776
        %v782 = vadd.f32 %v767, %v776
        %v783 = vadd.f32 %v768, %v776
        %v784 = vadd.f32 %v769, %v776
        %v785 = vadd.f32 %v770, %v776
        %v786 = vld [vmem:[%s394] sm:$0x1]
        %v788 = vlaneseq
        %v789 = vshrl.u32 %v788, 7
        %v790 = vsub.s32 0, %v789
        %v791 = vrot.slane %v786, %v790
        %v793 = vmul.f32 %v719, %v791
        %v794 = vmul.f32 %v720, %v791
        %v795 = vmul.f32 %v721, %v791
        %v796 = vmul.f32 %v722, %v791
        %v797 = vmul.f32 %v723, %v791
        %v798 = vmul.f32 %v724, %v791
        %v799 = vmul.f32 %v725, %v791
        %v800 = vmul.f32 %v726, %v791
        %v801 = vadd.f32 %v778, %v793
        %v802 = vadd.f32 %v779, %v794
        %v803 = vadd.f32 %v780, %v795
        %v804 = vadd.f32 %v781, %v796
        %v805 = vadd.f32 %v782, %v797
        %v806 = vadd.f32 %v783, %v798
        %v807 = vadd.f32 %v784, %v799
        %v808 = vadd.f32 %v785, %v800
        %s809 = scalar_lea.vmem %s394, 1 [#allocation9]
        %v810 = vld [vmem:[%s809] sm:$0x1]
        %v812 = vlaneseq
        %v813 = vshrl.u32 %v812, 7
        %v814 = vsub.s32 0, %v813
        %v815 = vrot.slane %v810, %v814
        %v817 = vmul.f32 %v488, %v815
        %v818 = vmul.f32 %v489, %v815
        %v819 = vmul.f32 %v490, %v815
        %v820 = vmul.f32 %v491, %v815
        %v821 = vmul.f32 %v492, %v815
        %v822 = vmul.f32 %v493, %v815
        %v823 = vmul.f32 %v494, %v815
        %v824 = vmul.f32 %v495, %v815
        %v825 = vadd.f32 %v801, %v817
        %v826 = vadd.f32 %v802, %v818
        %v827 = vadd.f32 %v803, %v819
        %v828 = vadd.f32 %v804, %v820
        %v829 = vadd.f32 %v805, %v821
        %v830 = vadd.f32 %v806, %v822
        %v831 = vadd.f32 %v807, %v823
        %v832 = vadd.f32 %v808, %v824
        %s833 = scalar_lea.vmem %s394, 2 [#allocation9]
        %v834 = vld [vmem:[%s833] sm:$0x1]
        %v836 = vlaneseq
        %v837 = vshrl.u32 %v836, 7
        %v838 = vsub.s32 0, %v837
        %v839 = vrot.slane %v834, %v838
        %v841 = vmul.f32 %v743, %v839
        %v842 = vmul.f32 %v744, %v839
        %v843 = vmul.f32 %v745, %v839
        %v844 = vmul.f32 %v746, %v839
        %v845 = vmul.f32 %v747, %v839
        %v846 = vmul.f32 %v748, %v839
        %v847 = vmul.f32 %v749, %v839
        %v848 = vmul.f32 %v750, %v839
        %v849 = vadd.f32 %v825, %v841
        %v850 = vadd.f32 %v826, %v842
        %v851 = vadd.f32 %v827, %v843
        %v852 = vadd.f32 %v828, %v844
        %v853 = vadd.f32 %v829, %v845
        %v854 = vadd.f32 %v830, %v846
        %v855 = vadd.f32 %v831, %v847
        %v856 = vadd.f32 %v832, %v848
        %s857 = scalar_lea.vmem %s394, 3 [#allocation9]
        %v858 = vld [vmem:[%s857] sm:$0x1]
        %v860 = vlaneseq
        %v861 = vshrl.u32 %v860, 7
        %v862 = vsub.s32 0, %v861
        %v863 = vrot.slane %v858, %v862
        %v865 = vmul.f32 %v721, %v863
        %v866 = vmul.f32 %v722, %v863
        %v867 = vmul.f32 %v723, %v863
        %v868 = vmul.f32 %v724, %v863
        %v869 = vmul.f32 %v725, %v863
        %v870 = vmul.f32 %v726, %v863
        %v871 = vmul.f32 %v727, %v863
        %v872 = vmul.f32 %v728, %v863
        %v873 = vadd.f32 %v849, %v865
        %v874 = vadd.f32 %v850, %v866
        %v875 = vadd.f32 %v851, %v867
        %v876 = vadd.f32 %v852, %v868
        %v877 = vadd.f32 %v853, %v869
        %v878 = vadd.f32 %v854, %v870
        %v879 = vadd.f32 %v855, %v871
        %v880 = vadd.f32 %v856, %v872
        %s881 = scalar_lea.vmem %s394, 5 [#allocation9]
        %v882 = vld [vmem:[%s881] sm:$0x1]
        %v884 = vlaneseq
        %v885 = vshrl.u32 %v884, 7
        %v886 = vsub.s32 0, %v885
        %v887 = vrot.slane %v882, %v886
        %v889 = vmul.f32 %v745, %v887
        %v890 = vmul.f32 %v746, %v887
        %v891 = vmul.f32 %v747, %v887
        %v892 = vmul.f32 %v748, %v887
        %v893 = vmul.f32 %v749, %v887
        %v894 = vmul.f32 %v750, %v887
        %v895 = vmul.f32 %v751, %v887
        %v896 = vmul.f32 %v752, %v887
        %v897 = vadd.f32 %v873, %v889
        %v898 = vadd.f32 %v874, %v890
        %v899 = vadd.f32 %v875, %v891
        %v900 = vadd.f32 %v876, %v892
        %v901 = vadd.f32 %v877, %v893
        %v902 = vadd.f32 %v878, %v894
        %v903 = vadd.f32 %v879, %v895
        %v904 = vadd.f32 %v880, %v896
        %s905 = scalar_lea.vmem %s394, 6 [#allocation9]
        %v906 = vld [vmem:[%s905] sm:$0x1]
        %v908 = vlaneseq
        %v909 = vshrl.u32 %v908, 7
        %v910 = vsub.s32 0, %v909
        %v911 = vrot.slane %v906, %v910
        %v913 = vmul.f32 %v723, %v911
        %v914 = vmul.f32 %v724, %v911
        %v915 = vmul.f32 %v725, %v911
        %v916 = vmul.f32 %v726, %v911
        %v917 = vmul.f32 %v727, %v911
        %v918 = vmul.f32 %v728, %v911
        %v919 = vmul.f32 %v729, %v911
        %v920 = vmul.f32 %v730, %v911
        %v921 = vadd.f32 %v897, %v913
        %v922 = vadd.f32 %v898, %v914
        %v923 = vadd.f32 %v899, %v915
        %v924 = vadd.f32 %v900, %v916
        %v925 = vadd.f32 %v901, %v917
        %v926 = vadd.f32 %v902, %v918
        %v927 = vadd.f32 %v903, %v919
        %v928 = vadd.f32 %v904, %v920
        %s929 = scalar_lea.vmem %s394, 7 [#allocation9]
        %v930 = vld [vmem:[%s929] sm:$0x1]
        %v932 = vlaneseq
        %v933 = vshrl.u32 %v932, 7
        %v934 = vsub.s32 0, %v933
        %v935 = vrot.slane %v930, %v934
        %v937 = vmul.f32 %v492, %v935
        %v938 = vmul.f32 %v493, %v935
        %v939 = vmul.f32 %v494, %v935
        %v940 = vmul.f32 %v495, %v935
        %v941 = vmul.f32 %v496, %v935
        %v942 = vmul.f32 %v497, %v935
        %v943 = vmul.f32 %v498, %v935
        %v944 = vmul.f32 %v499, %v935
        %v945 = vadd.f32 %v921, %v937
        %v946 = vadd.f32 %v922, %v938
        %v947 = vadd.f32 %v923, %v939
        %v948 = vadd.f32 %v924, %v940
        %v949 = vadd.f32 %v925, %v941
        %v950 = vadd.f32 %v926, %v942
        %v951 = vadd.f32 %v927, %v943
        %v952 = vadd.f32 %v928, %v944
        %s953 = scalar_lea.vmem %s394, 8 [#allocation9]
        %v954 = vld [vmem:[%s953] sm:$0x1]
        %v956 = vlaneseq
        %v957 = vshrl.u32 %v956, 7
        %v958 = vsub.s32 0, %v957
        %v959 = vrot.slane %v954, %v958
        %v961 = vmul.f32 %v747, %v959
        %v962 = vmul.f32 %v748, %v959
        %v963 = vmul.f32 %v749, %v959
        %v964 = vmul.f32 %v750, %v959
        %v965 = vmul.f32 %v751, %v959
        %v966 = vmul.f32 %v752, %v959
        %v967 = vmul.f32 %v753, %v959
        %v968 = vmul.f32 %v754, %v959
        %v969 = vadd.f32 %v945, %v961
        %v970 = vadd.f32 %v946, %v962
        %v971 = vadd.f32 %v947, %v963
        %v972 = vadd.f32 %v948, %v964
        %v973 = vadd.f32 %v949, %v965
        %v974 = vadd.f32 %v950, %v966
        %v975 = vadd.f32 %v951, %v967
        %v976 = vadd.f32 %v952, %v968
        %977 = vst [vmem:[%s438] sm:$0xff] %v969
        %978 = vst [vmem:[%s438 + $0x8] sm:$0xff] %v970
        %979 = vst [vmem:[%s438 + $0x10] sm:$0xff] %v971
        %980 = vst [vmem:[%s438 + $0x18] sm:$0xff] %v972
        %981 = vst [vmem:[%s438 + $0x20] sm:$0xff] %v973
        %982 = vst [vmem:[%s438 + $0x28] sm:$0xff] %v974
        %983 = vst [vmem:[%s438 + $0x30] sm:$0xff] %v975
        %984 = vst [vmem:[%s438 + $0x38] sm:$0xff] %v976
        %s985 = sand.u32 %s217, 1
        %s986 = scalar_lea.sflag [#allocation5], %s985
        %s987 = sand.u32 %s217, 1
        %s988 = smul.addr %s987, 64
        %s989 = scalar_lea.vmem [#allocation11], %s988
        // Predicated region
        $region57: #{tpu_custom_call.1} parent=39 // pred_check
          %p990 = pneg %p227
        $region58: #{tpu_custom_call.1} parent=39 // pred_check_branch
          %992 = sbr.rel (%p990) target = $region60
        $region59: #{tpu_custom_call.1} parent=39 // pred_region
          %s993 = smul.u32 8, %s35
          %s995 = ssub.s32 1024, 1024
          %996 = vsyncadd %s986, %s995
          %s997 = smul.addr %s993, 2
          %s998 = sadd.s32 %s33, %s997
          %s999 = smul.addr %s34, 64
          %s1000 = sadd.s32 %s998, %s999
          %s1001 = smul.addr %s1000, 128
          %s1002 = scalar_lea.hbm %s5, %s1001
          %s1003 = sshll.u32 %s989, 4
          %s1004 = int_to_ptr.vmem [resolvable:$true] %s1003
          %1009 = dma.vmem_to_hbm [thread:$0]  %s1004, 1024, %s1002, %s986, 128, 256, 8
        $region60: #{tpu_custom_call.1} parent=39 // pred_fallthru
          _
      $region40: #{tpu_custom_call.1} parent=5 // pred_fallthru
        _
      %p1010 = scmp.le.s32.totalorder 2, %s23
      // Predicated region
      $region61: #{tpu_custom_call.1} parent=5 // pred_check
        %p1011 = pneg %p1010
      $region62: #{tpu_custom_call.1} parent=5 // pred_check_branch
        %1013 = sbr.rel (%p1011) target = $region64
      $region63: #{tpu_custom_call.1} parent=5 // pred_region
        %s1014 = ssub.s32 %s23, 2
        // Predicated region
        $region65: #{tpu_custom_call.1} parent=63 // pred_check
          %p1015 = pneg %p233
        $region66: #{tpu_custom_call.1} parent=63 // pred_check_branch
          %1017 = sbr.rel (%p1015) target = $region68
        $region67: #{tpu_custom_call.1} parent=63 // pred_region
          %s1018 = sand.u32 %s218, 1
          %s1019 = scalar_lea.sflag [#allocation5], %s1018
          %s1020 = sand.u32 %s218, 1
          %s1021 = smul.addr %s1020, 64
          %s1022 = scalar_lea.vmem [#allocation11], %s1021
          %1023 = dma.done %s1019, 1024
        $region68: #{tpu_custom_call.1} parent=63 // pred_fallthru
          _
      $region64: #{tpu_custom_call.1} parent=5 // pred_fallthru
        _
    $region6: #{tpu_custom_call.1} parent=1 // loop_footer
      %s27 = sadd.s32 1, %s23
    $region7: #{tpu_custom_call.1} parent=1 // loop_footer_branch
      %22 = sbr.rel target = $region3
    $region8: #{tpu_custom_call.1} parent=1 // loop_exit
      _
    %1024 = vsyncpa [#allocation4], 1
    %s1025 = scalar_lea.sflag [#allocation4], 1
    %1026 = vsyncpa %s1025, 1
    %1027 = vsyncpa [#allocation7], 1
    %s1028 = scalar_lea.sflag [#allocation7], 1
    %1029 = vsyncpa %s1028, 1
    %1030 = vsyncpa [#allocation10], 1
    %s1031 = scalar_lea.sflag [#allocation10], 1
    %1032 = vsyncpa %s1031, 1
    %1033 = vsyncpa [#allocation5], 1
    %s1034 = scalar_lea.sflag [#allocation5], 1
    %1035 = vsyncpa %s1034, 1

</llo_original>
